<compile_context>
chip_gen: v5e
topology: v5e:2x2
jax: 0.10.0
libtpu: 0.0.40
codegen_flags: <defaults>
</compile_context>

<pallas_src>
import jax
import jax.numpy as jnp
from jax.experimental import pallas as pl
from jax.experimental.pallas import tpu as pltpu


def _round_up(x, m):
    return (x + m - 1) // m * m


def cmlp_kernel(xr_ref, xi_ref, w1r_ref, w1i_ref, b1_ref,
                w2_ref, b2_ref, w3_ref, b3_ref, out_ref):
    # layer 1: concat([real, imag], -1) @ W1 == real @ W1[:ni] + imag @ W1[ni:]
    h = jnp.dot(xr_ref[...], w1r_ref[...], preferred_element_type=jnp.float32)
    h = h + jnp.dot(xi_ref[...], w1i_ref[...],
                    preferred_element_type=jnp.float32)
    h = jnp.maximum(h + b1_ref[...], 0.0)            # ReLU (dropout = identity)

    # layer 2
    h = jnp.dot(h, w2_ref[...], preferred_element_type=jnp.float32) + b2_ref[...]
    h = jnp.maximum(h, 0.0)                          # ReLU (dropout = identity)

    # layer 3 (no activation)
    out = jnp.dot(h, w3_ref[...], preferred_element_type=jnp.float32) + b3_ref[...]
    out_ref[...] = out.astype(out_ref.dtype)


def complex_mlp_forward(x, params, *, tile_m=128):
    """ComplexMLP forward. `x` is complex with shape (..., num_inputs)."""
    lead = x.shape[:-1]
    ni = x.shape[-1]
    m = 1
    for d in lead:
        m *= d

    xr = jnp.real(x).reshape(m, ni).astype(jnp.float32)
    xi = jnp.imag(x).reshape(m, ni).astype(jnp.float32)

    w1, b1 = params["w1"], params["b1"]
    w2, b2 = params["w2"], params["b2"]
    w3, b3 = params["w3"], params["b3"]
    no = w3.shape[-1]
    w1r, w1i = w1[:ni], w1[ni:]          # split once, outside the kernel

    # Row-tile the flattened batch axis; pad rows to a multiple of the tile.
    tm = min(tile_m, _round_up(m, 8))
    m_pad = _round_up(m, tm)
    if m_pad != m:
        pad = ((0, m_pad - m), (0, 0))
        xr = jnp.pad(xr, pad)
        xi = jnp.pad(xi, pad)
    grid = (m_pad // tm,)

    def row_spec(c):
        return pl.BlockSpec((tm, c), lambda i: (i, 0))

    def full_spec(a):
        return pl.BlockSpec(a.shape, lambda i: (0,) * a.ndim)

    out = pl.pallas_call(
        cmlp_kernel,
        out_shape=jax.ShapeDtypeStruct((m_pad, no), jnp.float32),
        grid=grid,
        in_specs=[row_spec(ni), row_spec(ni),
                  full_spec(w1r), full_spec(w1i), full_spec(b1),
                  full_spec(w2), full_spec(b2),
                  full_spec(w3), full_spec(b3)],
        out_specs=row_spec(no),
        compiler_params=pltpu.CompilerParams(
            dimension_semantics=("parallel",)),
    )(xr, xi, w1r, w1i, b1, w2, b2, w3, b3)

    return out[:m].reshape(*lead, no)


def init_params(key, num_inputs, num_hidden, num_outputs):
    """Weights stored as (fan_in, fan_out); equivalent to nn.Linear(W.T)."""
    ks = jax.random.split(key, 6)

    def lin(kw, kb, fan_in, fan_out):
        bound = 1.0 / float(fan_in) ** 0.5
        w = jax.random.uniform(kw, (fan_in, fan_out), jnp.float32,
                               -bound, bound)
        b = jax.random.uniform(kb, (1, fan_out), jnp.float32, -bound, bound)
        return w, b

    w1, b1 = lin(ks[0], ks[1], 2 * num_inputs, num_hidden)
    w2, b2 = lin(ks[2], ks[3], num_hidden, num_hidden)
    w3, b3 = lin(ks[4], ks[5], num_hidden, num_outputs)
    return dict(w1=w1, b1=b1, w2=w2, b2=b2, w3=w3, b3=b3)


def ref_forward(x, params):
    """Pure-JAX reference mirroring the PyTorch forward (eval-mode dropout)."""
    xh = jnp.concatenate([jnp.real(x), jnp.imag(x)],
                         axis=-1).astype(jnp.float32)
    h = jax.nn.relu(xh @ params["w1"] + params["b1"].reshape(-1))
    h = jax.nn.relu(h @ params["w2"] + params["b2"].reshape(-1))
    return h @ params["w3"] + params["b3"].reshape(-1)


if __name__ == "__main__":
    key = jax.random.PRNGKey(0)
    kr, ki, kp = jax.random.split(key, 3)

    batch, seq, num_inputs = 2, 8, 4
    num_hidden, num_outputs = 32, 4

    x = (jax.random.normal(kr, (batch, seq, num_inputs), jnp.float32)
         + 1j * jax.random.normal(ki, (batch, seq, num_inputs), jnp.float32))
    x = x.astype(jnp.complex64)
    params = init_params(kp, num_inputs, num_hidden, num_outputs)

    out = complex_mlp_forward(x, params)
    jax.block_until_ready(out)

    ref = ref_forward(x, params)
    assert out.shape == (batch, seq, num_outputs), out.shape
    err = float(jnp.max(jnp.abs(out - ref)))
    assert jnp.allclose(out, ref, atol=1e-4, rtol=1e-4), f"max abs err {err}"

    print("KERNEL_OK")
</pallas_src>

<mosaic_0001>
module attributes {stable_mosaic.version = 11 : i64} {
  func.func @cmlp_kernel(%arg0: i32, %arg1: memref<16x4xf32, #tpu.memory_space<vmem>>, %arg2: memref<16x4xf32, #tpu.memory_space<vmem>>, %arg3: memref<4x32xf32, #tpu.memory_space<vmem>>, %arg4: memref<4x32xf32, #tpu.memory_space<vmem>>, %arg5: memref<1x32xf32, #tpu.memory_space<vmem>>, %arg6: memref<32x32xf32, #tpu.memory_space<vmem>>, %arg7: memref<1x32xf32, #tpu.memory_space<vmem>>, %arg8: memref<32x4xf32, #tpu.memory_space<vmem>>, %arg9: memref<1x4xf32, #tpu.memory_space<vmem>>, %arg10: memref<16x4xf32, #tpu.memory_space<vmem>>) attributes {dimension_semantics = [#tpu.dimension_semantics<parallel>], iteration_bounds = array<i64: 1>, scalar_prefetch = 0 : i64, scratch_operands = 0 : i64, tpu.core_type = #tpu.core_type<tc>, window_params = [{transform_indices = @transform_0, window_bounds = array<i64: 16, 4>}, {transform_indices = @transform_1, window_bounds = array<i64: 16, 4>}, {pipeline_mode = #tpu.pipeline_mode<synchronous>, transform_indices = @transform_2, window_bounds = array<i64: 4, 32>}, {pipeline_mode = #tpu.pipeline_mode<synchronous>, transform_indices = @transform_3, window_bounds = array<i64: 4, 32>}, {pipeline_mode = #tpu.pipeline_mode<synchronous>, transform_indices = @transform_4, window_bounds = array<i64: 1, 32>}, {pipeline_mode = #tpu.pipeline_mode<synchronous>, transform_indices = @transform_5, window_bounds = array<i64: 32, 32>}, {pipeline_mode = #tpu.pipeline_mode<synchronous>, transform_indices = @transform_6, window_bounds = array<i64: 1, 32>}, {pipeline_mode = #tpu.pipeline_mode<synchronous>, transform_indices = @transform_7, window_bounds = array<i64: 32, 4>}, {pipeline_mode = #tpu.pipeline_mode<synchronous>, transform_indices = @transform_8, window_bounds = array<i64: 1, 4>}, {transform_indices = @transform_9, window_bounds = array<i64: 16, 4>}]} {
    %c0 = arith.constant 0 : index
    %c0_0 = arith.constant 0 : index
    %0 = vector.load %arg1[%c0, %c0_0] : memref<16x4xf32, #tpu.memory_space<vmem>>, vector<16x4xf32>
    %c0_1 = arith.constant 0 : index
    %c0_2 = arith.constant 0 : index
    %1 = vector.load %arg3[%c0_1, %c0_2] : memref<4x32xf32, #tpu.memory_space<vmem>>, vector<4x32xf32>
    %cst = arith.constant dense<0.000000e+00> : vector<16x32xf32>
    %2 = tpu.matmul %0, %1, %cst {dimension_numbers = #tpu.dot_dimension_numbers<[1], [0], [0], [1], [0, 0, 1, 1], [], []>} : vector<16x4xf32>, vector<4x32xf32>, vector<16x32xf32> -> vector<16x32xf32>
    %c0_3 = arith.constant 0 : index
    %c0_4 = arith.constant 0 : index
    %3 = vector.load %arg2[%c0_3, %c0_4] : memref<16x4xf32, #tpu.memory_space<vmem>>, vector<16x4xf32>
    %c0_5 = arith.constant 0 : index
    %c0_6 = arith.constant 0 : index
    %4 = vector.load %arg4[%c0_5, %c0_6] : memref<4x32xf32, #tpu.memory_space<vmem>>, vector<4x32xf32>
    %cst_7 = arith.constant dense<0.000000e+00> : vector<16x32xf32>
    %5 = tpu.matmul %3, %4, %cst_7 {dimension_numbers = #tpu.dot_dimension_numbers<[1], [0], [0], [1], [0, 0, 1, 1], [], []>} : vector<16x4xf32>, vector<4x32xf32>, vector<16x32xf32> -> vector<16x32xf32>
    %6 = arith.addf %2, %5 : vector<16x32xf32>
    %c0_8 = arith.constant 0 : index
    %c0_9 = arith.constant 0 : index
    %7 = vector.load %arg5[%c0_8, %c0_9] : memref<1x32xf32, #tpu.memory_space<vmem>>, vector<1x32xf32>
    %8 = vector.broadcast %7 : vector<1x32xf32> to vector<16x32xf32>
    %9 = arith.addf %6, %8 : vector<16x32xf32>
    %cst_10 = arith.constant 0.000000e+00 : f32
    %10 = vector.broadcast %cst_10 : f32 to vector<16x32xf32>
    %11 = arith.maximumf %9, %10 : vector<16x32xf32>
    %c0_11 = arith.constant 0 : index
    %c0_12 = arith.constant 0 : index
    %12 = vector.load %arg6[%c0_11, %c0_12] : memref<32x32xf32, #tpu.memory_space<vmem>>, vector<32x32xf32>
    %cst_13 = arith.constant dense<0.000000e+00> : vector<16x32xf32>
    %13 = tpu.matmul %11, %12, %cst_13 {dimension_numbers = #tpu.dot_dimension_numbers<[1], [0], [0], [1], [0, 0, 1, 1], [], []>} : vector<16x32xf32>, vector<32x32xf32>, vector<16x32xf32> -> vector<16x32xf32>
    %c0_14 = arith.constant 0 : index
    %c0_15 = arith.constant 0 : index
    %14 = vector.load %arg7[%c0_14, %c0_15] : memref<1x32xf32, #tpu.memory_space<vmem>>, vector<1x32xf32>
    %15 = vector.broadcast %14 : vector<1x32xf32> to vector<16x32xf32>
    %16 = arith.addf %13, %15 : vector<16x32xf32>
    %cst_16 = arith.constant 0.000000e+00 : f32
    %17 = vector.broadcast %cst_16 : f32 to vector<16x32xf32>
    %18 = arith.maximumf %16, %17 : vector<16x32xf32>
    %c0_17 = arith.constant 0 : index
    %c0_18 = arith.constant 0 : index
    %19 = vector.load %arg8[%c0_17, %c0_18] : memref<32x4xf32, #tpu.memory_space<vmem>>, vector<32x4xf32>
    %cst_19 = arith.constant dense<0.000000e+00> : vector<16x4xf32>
    %20 = tpu.matmul %18, %19, %cst_19 {dimension_numbers = #tpu.dot_dimension_numbers<[1], [0], [0], [1], [0, 0, 1, 1], [], []>} : vector<16x32xf32>, vector<32x4xf32>, vector<16x4xf32> -> vector<16x4xf32>
    %c0_20 = arith.constant 0 : index
    %c0_21 = arith.constant 0 : index
    %21 = vector.load %arg9[%c0_20, %c0_21] : memref<1x4xf32, #tpu.memory_space<vmem>>, vector<1x4xf32>
    %22 = vector.broadcast %21 : vector<1x4xf32> to vector<16x4xf32>
    %23 = arith.addf %20, %22 : vector<16x4xf32>
    %c0_22 = arith.constant 0 : index
    %c0_23 = arith.constant 0 : index
    %24 = vector.load %arg10[%c0_22, %c0_23] : memref<16x4xf32, #tpu.memory_space<vmem>>, vector<16x4xf32>
    tpu.vector_store %arg10[%c0_22, %c0_23], %23 {strides = array<i32>} : memref<16x4xf32, #tpu.memory_space<vmem>>, vector<16x4xf32>,
    return
  }
  func.func @transform_0(%arg0: i32) -> (i32, i32) {
    %c0_i32 = arith.constant 0 : i32
    %c0_i32_0 = arith.constant 0 : i32
    return %arg0, %c0_i32 : i32, i32
  }
  func.func @transform_1(%arg0: i32) -> (i32, i32) {
    %c0_i32 = arith.constant 0 : i32
    %c0_i32_0 = arith.constant 0 : i32
    return %arg0, %c0_i32 : i32, i32
  }
  func.func @transform_2(%arg0: i32) -> (i32, i32) {
    %c0_i32 = arith.constant 0 : i32
    %c0_i32_0 = arith.constant 0 : i32
    %c0_i32_1 = arith.constant 0 : i32
    return %c0_i32, %c0_i32_0 : i32, i32
  }
  func.func @transform_3(%arg0: i32) -> (i32, i32) {
    %c0_i32 = arith.constant 0 : i32
    %c0_i32_0 = arith.constant 0 : i32
    %c0_i32_1 = arith.constant 0 : i32
    return %c0_i32, %c0_i32_0 : i32, i32
  }
  func.func @transform_4(%arg0: i32) -> (i32, i32) {
    %c0_i32 = arith.constant 0 : i32
    %c0_i32_0 = arith.constant 0 : i32
    %c0_i32_1 = arith.constant 0 : i32
    return %c0_i32, %c0_i32_0 : i32, i32
  }
  func.func @transform_5(%arg0: i32) -> (i32, i32) {
    %c0_i32 = arith.constant 0 : i32
    %c0_i32_0 = arith.constant 0 : i32
    %c0_i32_1 = arith.constant 0 : i32
    return %c0_i32, %c0_i32_0 : i32, i32
  }
  func.func @transform_6(%arg0: i32) -> (i32, i32) {
    %c0_i32 = arith.constant 0 : i32
    %c0_i32_0 = arith.constant 0 : i32
    %c0_i32_1 = arith.constant 0 : i32
    return %c0_i32, %c0_i32_0 : i32, i32
  }
  func.func @transform_7(%arg0: i32) -> (i32, i32) {
    %c0_i32 = arith.constant 0 : i32
    %c0_i32_0 = arith.constant 0 : i32
    %c0_i32_1 = arith.constant 0 : i32
    return %c0_i32, %c0_i32_0 : i32, i32
  }
  func.func @transform_8(%arg0: i32) -> (i32, i32) {
    %c0_i32 = arith.constant 0 : i32
    %c0_i32_0 = arith.constant 0 : i32
    %c0_i32_1 = arith.constant 0 : i32
    return %c0_i32, %c0_i32_0 : i32, i32
  }
  func.func @transform_9(%arg0: i32) -> (i32, i32) {
    %c0_i32 = arith.constant 0 : i32
    %c0_i32_0 = arith.constant 0 : i32
    return %arg0, %c0_i32 : i32, i32
  }
}

</mosaic_0001>

<llo_original>
// kernel: tpu_custom_call.1
$region0: #{tpu_custom_call.1}
  #allocation0 [shape = 'u32[]', space=smem, size = 0x4, offset = 0x4, fixed_abs, tag = 'smem constant byte address 0x4 - core index']
  #allocation1 [shape = 'u32[72,128]{1,0:T(1,128)}', space=vmem, size = 0x9000, scoped, tag = 'internal scratch']
  %s0 = inlined_call_operand.vmem [shape: f32[16,4], index: 0, kind: input, shape index: {}]
  %s1 = inlined_call_operand.vmem [shape: f32[16,4], index: 1, kind: input, shape index: {}]
  %s2 = inlined_call_operand.vmem [shape: f32[4,32], index: 2, kind: input, shape index: {}]
  %s3 = inlined_call_operand.vmem [shape: f32[4,32], index: 3, kind: input, shape index: {}]
  %s4 = inlined_call_operand.vmem [shape: f32[1,32], index: 4, kind: input, shape index: {}]
  %s5 = inlined_call_operand.vmem [shape: f32[32,32], index: 5, kind: input, shape index: {}]
  %s6 = inlined_call_operand.vmem [shape: f32[1,32], index: 6, kind: input, shape index: {}]
  %s7 = inlined_call_operand.vmem [shape: f32[32,4], index: 7, kind: input, shape index: {}]
  %s8 = inlined_call_operand.vmem [shape: f32[1,4], index: 8, kind: input, shape index: {}]
  %s9 = inlined_call_operand.vmem [shape: f32[16,4], index: 9, kind: output, shape index: {}]
  %s10 = sld [smem:[#allocation0]]
  $region46: #{tpu_custom_call.1} parent=0
    _
  %s12 = ssub.s32 1, %s10
  %s13 = scalar_select 0, %s12, %s10
  // Predicated region
  $region2: #{tpu_custom_call.1} parent=0 // pred_check
    _
  $region3: #{tpu_custom_call.1} parent=0 // pred_check_branch
    %15 = sbr.rel (0) target = $region5
  $region4: #{tpu_custom_call.1} parent=0 // pred_region
    _
  $region5: #{tpu_custom_call.1} parent=0 // pred_fallthru
    _
  // Predicated region
  $region6: #{tpu_custom_call.1} parent=0 // pred_check
    _
  $region7: #{tpu_custom_call.1} parent=0 // pred_check_branch
    %17 = sbr.rel (0) target = $region9
  $region8: #{tpu_custom_call.1} parent=0 // pred_region
    _
  $region9: #{tpu_custom_call.1} parent=0 // pred_fallthru
    _
  // Predicated region
  $region10: #{tpu_custom_call.1} parent=0 // pred_check
    _
  $region11: #{tpu_custom_call.1} parent=0 // pred_check_branch
    %19 = sbr.rel (0) target = $region13
  $region12: #{tpu_custom_call.1} parent=0 // pred_region
    _
  $region13: #{tpu_custom_call.1} parent=0 // pred_fallthru
    _
  // Predicated region
  $region14: #{tpu_custom_call.1} parent=0 // pred_check
    _
  $region15: #{tpu_custom_call.1} parent=0 // pred_check_branch
    %21 = sbr.rel (0) target = $region17
  $region16: #{tpu_custom_call.1} parent=0 // pred_region
    _
  $region17: #{tpu_custom_call.1} parent=0 // pred_fallthru
    _
  // Predicated region
  $region18: #{tpu_custom_call.1} parent=0 // pred_check
    _
  $region19: #{tpu_custom_call.1} parent=0 // pred_check_branch
    %23 = sbr.rel (0) target = $region21
  $region20: #{tpu_custom_call.1} parent=0 // pred_region
    _
  $region21: #{tpu_custom_call.1} parent=0 // pred_fallthru
    _
  // Predicated region
  $region22: #{tpu_custom_call.1} parent=0 // pred_check
    _
  $region23: #{tpu_custom_call.1} parent=0 // pred_check_branch
    %25 = sbr.rel (0) target = $region25
  $region24: #{tpu_custom_call.1} parent=0 // pred_region
    _
  $region25: #{tpu_custom_call.1} parent=0 // pred_fallthru
    _
  // Predicated region
  $region26: #{tpu_custom_call.1} parent=0 // pred_check
    _
  $region27: #{tpu_custom_call.1} parent=0 // pred_check_branch
    %27 = sbr.rel (0) target = $region29
  $region28: #{tpu_custom_call.1} parent=0 // pred_region
    _
  $region29: #{tpu_custom_call.1} parent=0 // pred_fallthru
    _
  // Predicated region
  $region30: #{tpu_custom_call.1} parent=0 // pred_check
    _
  $region31: #{tpu_custom_call.1} parent=0 // pred_check_branch
    %29 = sbr.rel (0) target = $region33
  $region32: #{tpu_custom_call.1} parent=0 // pred_region
    _
  $region33: #{tpu_custom_call.1} parent=0 // pred_fallthru
    _
  // Predicated region
  $region34: #{tpu_custom_call.1} parent=0 // pred_check
    _
  $region35: #{tpu_custom_call.1} parent=0 // pred_check_branch
    %31 = sbr.rel (0) target = $region37
  $region36: #{tpu_custom_call.1} parent=0 // pred_region
    _
  $region37: #{tpu_custom_call.1} parent=0 // pred_fallthru
    _
  %v32 = vld [vmem:[%s0] sm:$0xff]
  %v33 = vld [vmem:[%s0 + $0x8] sm:$0xff]
  %v34 = vld [vmem:[%s2] sm:$0xf]
  %v35 = vld [vmem:[%s1] sm:$0xff]
  %v36 = vld [vmem:[%s1 + $0x8] sm:$0xff]
  %v37 = vld [vmem:[%s3] sm:$0xf]
  %vm38 = vcmask 31744
  %v40 = vsel %vm38, %v35, 0
  %v43 = vsel %vm38, %v36, 0
  %vm45 = vcmask 1043456
  %v47 = vsel %vm45, %v37, 0
  %49 = vmatpush.msra.mxu0 0.0
  %50 = vmatpush.msra.mxu0 0.0
  %51 = vmatpush.msra.mxu0 0.0
  %52 = vmatpush.msra.mxu0 0.0
  %53 = vmatpush.msra.mxu0 0.0
  %54 = vmatpush.msra.mxu0 0.0
  %55 = vmatpush.msra.mxu0 0.0
  %56 = vmatpush.msra.mxu0 0.0
  %57 = vmatpush.msra.mxu0 0.0
  %58 = vmatpush.msra.mxu0 0.0
  %59 = vmatpush.msra.mxu0 0.0
  %60 = vmatpush.msra.mxu0 0.0
  %61 = vmatpush.msra.mxu0 0.0
  %62 = vmatpush.msra.mxu0 0.0
  %63 = vmatpush.msra.mxu0 0.0
  %64 = vmatpush.msra.mxu0 %v47
  %65 = vmatmul.f32.gmra.mxu0 %v40
  %v66 = vpop.f32.mrf.mxu0
  %v67 = vadd.f32 0.0, %v66
  %68 = vmatmul.f32.gmra.mxu0 %v43
  %v69 = vpop.f32.mrf.mxu0
  %v70 = vadd.f32 0.0, %v69
  %71 = vdwg.mxu0
  %v73 = vsel %vm38, %v32, 0
  %v76 = vsel %vm38, %v33, 0
  %v79 = vsel %vm45, %v34, 0
  %81 = vmatpush.msra.mxu0 0.0
  %82 = vmatpush.msra.mxu0 0.0
  %83 = vmatpush.msra.mxu0 0.0
  %84 = vmatpush.msra.mxu0 0.0
  %85 = vmatpush.msra.mxu0 0.0
  %86 = vmatpush.msra.mxu0 0.0
  %87 = vmatpush.msra.mxu0 0.0
  %88 = vmatpush.msra.mxu0 0.0
  %89 = vmatpush.msra.mxu0 0.0
  %90 = vmatpush.msra.mxu0 0.0
  %91 = vmatpush.msra.mxu0 0.0
  %92 = vmatpush.msra.mxu0 0.0
  %93 = vmatpush.msra.mxu0 0.0
  %94 = vmatpush.msra.mxu0 0.0
  %95 = vmatpush.msra.mxu0 0.0
  %96 = vmatpush.msra.mxu0 %v79
  %97 = vmatmul.f32.gmra.mxu0 %v73
  %v98 = vpop.f32.mrf.mxu0
  %v99 = vadd.f32 %v67, %v98
  %100 = vmatmul.f32.gmra.mxu0 %v76
  %v101 = vpop.f32.mrf.mxu0
  %v102 = vadd.f32 %v70, %v101
  %103 = vdwg.mxu0
  %v104 = vld [vmem:[%s4] sm:$0x1]
  %v106 = vperm.slane %v104, 0
  %v108 = vadd.f32 %v99, %v106
  %v109 = vadd.f32 %v102, %v106
  %v110 = vmax.f32 %v108, 0.0
  %v111 = vmax.f32 %v109, 0.0
  %v112 = vld [vmem:[%s5] sm:$0xff]
  %v113 = vld [vmem:[%s5 + $0x8] sm:$0xff]
  %v114 = vld [vmem:[%s5 + $0x10] sm:$0xff]
  %v115 = vld [vmem:[%s5 + $0x18] sm:$0xff]
  %v116 = vld [vmem:[%s6] sm:$0x1]
  %v118 = vperm.slane %v116, 0
  %vm120 = vcmask 261120
  %v122 = vsel %vm120, %v110, 0
  %v125 = vsel %vm120, %v111, 0
  %127 = vmatpush.msra.mxu0 0.0
  %128 = vmatpush.msra.mxu0 0.0
  %129 = vmatpush.msra.mxu0 0.0
  %130 = vmatpush.msra.mxu0 0.0
  %131 = vmatpush.msra.mxu0 0.0
  %132 = vmatpush.msra.mxu0 0.0
  %133 = vmatpush.msra.mxu0 0.0
  %134 = vmatpush.msra.mxu0 0.0
  %135 = vmatpush.msra.mxu0 0.0
  %136 = vmatpush.msra.mxu0 0.0
  %137 = vmatpush.msra.mxu0 0.0
  %138 = vmatpush.msra.mxu0 0.0
  %139 = vmatpush.msra.mxu0 %v115
  %140 = vmatpush.msra.mxu0 %v114
  %141 = vmatpush.msra.mxu0 %v113
  %142 = vmatpush.msra.mxu0 %v112
  %143 = vmatmul.f32.gmra.mxu0 %v122
  %v144 = vpop.f32.mrf.mxu0
  %v145 = vadd.f32 %v118, %v144
  %146 = vmatmul.f32.gmra.mxu0 %v125
  %v147 = vpop.f32.mrf.mxu0
  %v148 = vadd.f32 %v118, %v147
  %149 = vdwg.mxu0
  %v150 = vmax.f32 %v145, 0.0
  %v151 = vmax.f32 %v148, 0.0
  %v152 = vld [vmem:[%s7] sm:$0xff]
  %v153 = vld [vmem:[%s7 + $0x8] sm:$0xff]
  %v154 = vld [vmem:[%s7 + $0x10] sm:$0xff]
  %v155 = vld [vmem:[%s7 + $0x18] sm:$0xff]
  %v156 = vld [vmem:[%s8] sm:$0x1]
  %v158 = vperm.slane %v156, 0
  %v161 = vsel %vm120, %v150, 0
  %v164 = vsel %vm120, %v151, 0
  %166 = vmatpush.msra.mxu0 0.0
  %167 = vmatpush.msra.mxu0 0.0
  %168 = vmatpush.msra.mxu0 0.0
  %169 = vmatpush.msra.mxu0 0.0
  %170 = vmatpush.msra.mxu0 0.0
  %171 = vmatpush.msra.mxu0 0.0
  %172 = vmatpush.msra.mxu0 0.0
  %173 = vmatpush.msra.mxu0 0.0
  %174 = vmatpush.msra.mxu0 0.0
  %175 = vmatpush.msra.mxu0 0.0
  %176 = vmatpush.msra.mxu0 0.0
  %177 = vmatpush.msra.mxu0 0.0
  %178 = vmatpush.msra.mxu0 %v155
  %179 = vmatpush.msra.mxu0 %v154
  %180 = vmatpush.msra.mxu0 %v153
  %181 = vmatpush.msra.mxu0 %v152
  %182 = vmatmul.f32.gmra.mxu0 %v161
  %v183 = vpop.f32.mrf.mxu0
  %v184 = vadd.f32 %v158, %v183
  %185 = vmatmul.f32.gmra.mxu0 %v164
  %v186 = vpop.f32.mrf.mxu0
  %v187 = vadd.f32 %v158, %v186
  %188 = vdwg.mxu0
  %189 = vst.msk [vmem:[%s9] sm:$0xff] %vm38, %v184
  %190 = vst.msk [vmem:[%s9 + $0x8] sm:$0xff] %vm38, %v187
  // Predicated region
  $region38: #{tpu_custom_call.1} parent=0 // pred_check
    _
  $region39: #{tpu_custom_call.1} parent=0 // pred_check_branch
    %192 = sbr.rel (0) target = $region41
  $region40: #{tpu_custom_call.1} parent=0 // pred_region
    _
  $region41: #{tpu_custom_call.1} parent=0 // pred_fallthru
    _
  // Predicated region
  $region42: #{tpu_custom_call.1} parent=0 // pred_check
    _
  $region43: #{tpu_custom_call.1} parent=0 // pred_check_branch
    %194 = sbr.rel (0) target = $region45
  $region44: #{tpu_custom_call.1} parent=0 // pred_region
    _
  $region45: #{tpu_custom_call.1} parent=0 // pred_fallthru
    _

</llo_original>
